<compile_context>
chip_gen: v7x
topology: tpu7x:2x2x1
jax: 0.10.0
libtpu: 0.0.40
codegen_flags: <defaults>
</compile_context>

<pallas_src>
import functools

import jax
import jax.numpy as jnp
from jax.experimental import pallas as pl
from jax.experimental.pallas import tpu as pltpu

_LANE = 128  # vreg lane width: stored last dims should be multiples of this.


def _fused_mlp_kernel(x_ref, *refs, num_layers: int):
    """Fused MLP: chain of (matmul [+ SiLU]) entirely in VMEM/vregs.

    x_ref : (TB, dim_in)              VMEM batch tile
    refs  : (w0_ref, ..., wL_ref, o_ref)
            wi_ref : (fan_in_i, fan_out_i) VMEM weight, stored as (in, out) = W.T
            o_ref  : (TB, out_padded)  VMEM output tile (only HBM store of the kernel)
    """
    w_refs = refs[:num_layers]
    o_ref = refs[num_layers]

    compute_dtype = w_refs[0].dtype            # bf16 weights -> bf16 MXU operands
    h = x_ref[...].astype(compute_dtype)
    for i in range(num_layers):
        # bf16 x bf16 -> f32 accumulation on the MXU.
        acc = jnp.dot(h, w_refs[i][...], preferred_element_type=jnp.float32)
        if i < num_layers - 1:
            # SiLU(x) = x * sigmoid(x) on the f32 accumulator (sigmoid -> EUP,
            # multiply -> VPU; f32 keeps v5e happy), then downcast only the
            # activation handed to the next matmul.
            acc = acc * jax.nn.sigmoid(acc)
            h = acc.astype(compute_dtype)
        else:
            o_ref[...] = acc.astype(o_ref.dtype)
    # TODO(synk): at production width, use two ping-pong VMEM scratch buffers for h and
    # stream weight tiles with pltpu.emit_pipeline instead of relying on vreg residency.


def _round_up(x: int, m: int) -> int:
    return ((x + m - 1) // m) * m


def _vmem_capacity_bytes() -> int:
    """Per-core VMEM capacity; conservative fallback is v7x's 64 MiB."""
    try:
        return int(pltpu.get_tpu_info().vmem_capacity_bytes)
    except Exception:  # query unavailable (e.g. interpret mode)
        return 64 * 1024 * 1024


def _estimate_vmem_bytes(tb, dim_in, out_pad, kernel_params, x_itemsize, out_itemsize):
    """Estimated VMEM residency for one grid step."""
    # Weights: single-buffered (pl.Buffered(1)).
    weight_bytes = sum(int(w.size) * w.dtype.itemsize for w in kernel_params)
    x_bytes = 2 * tb * dim_in * x_itemsize          # double-buffered input tile
    o_bytes = 2 * tb * out_pad * out_itemsize       # double-buffered output tile
    max_width = max(max(w.shape[1] for w in kernel_params), out_pad)
    act_bytes = 2 * tb * max_width * 4              # f32 accumulator + bf16 h headroom
    return weight_bytes + x_bytes + o_bytes + act_bytes


def _pick_batch_tile(batch: int, fits) -> int:
    """Largest MXU-shaped batch tile that divides batch, fits VMEM, and (when batch
    permits) leaves >= 2 grid steps so v7x's second TensorCore gets work."""
    for check_budget in (True, False):
        best = None
        for cand in (256, 128, 64, 32, 16, 8):
            if batch % cand != 0:
                continue
            if check_budget and not fits(cand):
                continue
            if best is None:
                best = cand                       # largest feasible candidate
            if batch // cand >= 2:
                return cand                       # prefer >= 2 tiles (v7x megacore)
        if best is not None:
            return best
    return batch  # block equal to the full dim is always legal


def mlp_forward(x: jax.Array, params) -> jax.Array:
    """Whole-MLP forward as a single pallas_call.

    x      : (batch, dim_in)
    params : list of weights stored as (fan_in, fan_out) = nn.Linear.weight.T
    """
    batch, dim_in = x.shape
    assert params[0].shape[0] == dim_in
    dim_out = params[-1].shape[1]

    # Lane-dense output: pad the final projection to a multiple of 128 lanes so the
    # only HBM store is an unmasked full-lane store; slice the padding off afterwards.
    out_pad = _round_up(dim_out, _LANE)
    w_last = params[-1]
    if out_pad != dim_out:
        w_last = jnp.pad(w_last, ((0, 0), (0, out_pad - dim_out)))
    kernel_params = list(params[:-1]) + [w_last]
    num_layers = len(kernel_params)

    x_itemsize = x.dtype.itemsize
    out_itemsize = x_itemsize

    capacity = _vmem_capacity_bytes()
    budget = min(capacity, 64 * 1024 * 1024) // 2   # stay well inside v7x's 64 MiB

    def fits(tb):
        return _estimate_vmem_bytes(
            tb, dim_in, out_pad, kernel_params, x_itemsize, out_itemsize) <= budget

    tb = _pick_batch_tile(batch, fits)
    grid = (batch // tb,)

    est = _estimate_vmem_bytes(tb, dim_in, out_pad, kernel_params, x_itemsize, out_itemsize)
    vmem_limit = int(min(max(2 * est + (4 << 20), 16 << 20), min(capacity, 128 << 20)))

    in_specs = [pl.BlockSpec((tb, dim_in), lambda i: (i, 0))]
    for w in kernel_params:
        fi, fo = w.shape
        # Grid-invariant weights: single buffer — default double-buffering wastes VMEM.
        in_specs.append(
            pl.BlockSpec((fi, fo), lambda i: (0, 0), pipeline_mode=pl.Buffered(1)))
    out_specs = pl.BlockSpec((tb, out_pad), lambda i: (i, 0))

    # Advisory cost estimate with real itemsizes: 2*M*K*N flops per layer, one sigmoid
    # per hidden activation element.
    flops = 2 * batch * sum(w.shape[0] * w.shape[1] for w in kernel_params)
    transcendentals = batch * sum(w.shape[1] for w in kernel_params[:-1])
    bytes_accessed = (x.size * x_itemsize
                      + sum(int(w.size) * w.dtype.itemsize for w in kernel_params)
                      + batch * out_pad * out_itemsize)

    kernel = functools.partial(_fused_mlp_kernel, num_layers=num_layers)
    out = pl.pallas_call(
        kernel,
        out_shape=jax.ShapeDtypeStruct((batch, out_pad), x.dtype),
        grid=grid,
        in_specs=in_specs,
        out_specs=out_specs,
        compiler_params=pltpu.CompilerParams(
            dimension_semantics=("parallel",),   # shard batch tiles over v7x's 2 TCs
            vmem_limit_bytes=vmem_limit,
        ),
        cost_estimate=pl.CostEstimate(
            flops=flops,
            transcendentals=transcendentals,
            bytes_accessed=bytes_accessed,
        ),
    )(x, *kernel_params)

    return out[:, :dim_out] if out_pad != dim_out else out


def init_mlp_params(key, dim_in: int, dim_out: int, width: int, depth: int,
                    dtype=jnp.bfloat16):
    """Deterministic parameter init mirroring the module's layer shapes.

    Returns a list of weights stored as (in, out) = nn.Linear.weight.T, in bf16
    (native MXU operand format; matmuls accumulate in f32).
    """
    dims = [(dim_in, width)] + [(width, width)] * depth + [(width, dim_out)]
    params = []
    for fan_in, fan_out in dims:
        key, sub = jax.random.split(key)
        bound = 1.0 / float(fan_in) ** 0.5   # nn.Linear-style uniform bound
        w = jax.random.uniform(sub, (fan_in, fan_out), jnp.float32,
                               minval=-bound, maxval=bound)
        params.append(w.astype(dtype))
    return params


def mlp_forward_ref(x: jax.Array, params) -> jax.Array:
    """Pure-JAX reference with the same numerics recipe as the kernel:
    bf16 operands, f32 accumulation, SiLU on f32, bf16 inter-layer activations."""
    compute_dtype = params[0].dtype
    n = len(params)
    h = x.astype(compute_dtype)
    out = None
    for i, w in enumerate(params):
        acc = jnp.dot(h, w, preferred_element_type=jnp.float32)
        if i < n - 1:
            acc = acc * jax.nn.sigmoid(acc)
            h = acc.astype(compute_dtype)
        else:
            out = acc.astype(x.dtype)
    return out


if __name__ == "__main__":
    # Small shapes consistent with the module's forward: x is (batch, dim_in).
    # TODO(synk): these toy dims (M=8, K<=32, N<=32) leave the 128/256-wide MXU >90%
    # idle; for perf-relevant runs use width as a multiple of 128/256 and batch >= 256.
    batch, dim_in, dim_out, width, depth = 8, 16, 4, 32, 2

    key = jax.random.PRNGKey(0)
    key_x, key_p = jax.random.split(key)
    x = jax.random.normal(key_x, (batch, dim_in), jnp.float32)
    params = init_mlp_params(key_p, dim_in, dim_out, width, depth)

    out = jax.jit(mlp_forward)(x, params)
    out = jax.block_until_ready(out)

    ref = mlp_forward_ref(x, params)
    assert out.shape == (batch, dim_out)
    assert jnp.allclose(out, ref, atol=1e-2, rtol=1e-2)

    print("KERNEL_OK")
</pallas_src>

<mosaic_0001>
module attributes {stable_mosaic.version = 11 : i64} {
  func.func @_fused_mlp_kernel(%arg0: i32, %arg1: memref<8x16xf32, #tpu.memory_space<vmem>>, %arg2: memref<16x32xbf16, #tpu.memory_space<vmem>>, %arg3: memref<32x32xbf16, #tpu.memory_space<vmem>>, %arg4: memref<32x32xbf16, #tpu.memory_space<vmem>>, %arg5: memref<32x128xbf16, #tpu.memory_space<vmem>>, %arg6: memref<8x128xf32, #tpu.memory_space<vmem>>) attributes {dimension_semantics = [#tpu.dimension_semantics<parallel>], iteration_bounds = array<i64: 1>, scalar_prefetch = 0 : i64, scratch_operands = 0 : i64, tpu.core_type = #tpu.core_type<tc>, window_params = [{transform_indices = @transform_0, window_bounds = array<i64: 8, 16>}, {pipeline_mode = #tpu.pipeline_mode<synchronous>, transform_indices = @transform_1, window_bounds = array<i64: 16, 32>}, {pipeline_mode = #tpu.pipeline_mode<synchronous>, transform_indices = @transform_2, window_bounds = array<i64: 32, 32>}, {pipeline_mode = #tpu.pipeline_mode<synchronous>, transform_indices = @transform_3, window_bounds = array<i64: 32, 32>}, {pipeline_mode = #tpu.pipeline_mode<synchronous>, transform_indices = @transform_4, window_bounds = array<i64: 32, 128>}, {transform_indices = @transform_5, window_bounds = array<i64: 8, 128>}]} {
    %c0 = arith.constant 0 : index
    %c0_0 = arith.constant 0 : index
    %0 = vector.load %arg1[%c0, %c0_0] : memref<8x16xf32, #tpu.memory_space<vmem>>, vector<8x16xf32>
    %1 = arith.truncf %0 : vector<8x16xf32> to vector<8x16xbf16>
    %c0_1 = arith.constant 0 : index
    %c0_2 = arith.constant 0 : index
    %2 = vector.load %arg2[%c0_1, %c0_2] : memref<16x32xbf16, #tpu.memory_space<vmem>>, vector<16x32xbf16>
    %cst = arith.constant dense<0.000000e+00> : vector<8x32xf32>
    %3 = tpu.matmul %1, %2, %cst {dimension_numbers = #tpu.dot_dimension_numbers<[1], [0], [0], [1], [0, 0, 1, 1], [], []>} : vector<8x16xbf16>, vector<16x32xbf16>, vector<8x32xf32> -> vector<8x32xf32>
    %4 = arith.negf %3 : vector<8x32xf32>
    %5 = math.exp %4 : vector<8x32xf32>
    %cst_3 = arith.constant 1.000000e+00 : f32
    %6 = vector.broadcast %cst_3 : f32 to vector<8x32xf32>
    %7 = arith.addf %6, %5 : vector<8x32xf32>
    %8 = arith.divf %6, %7 : vector<8x32xf32>
    %9 = arith.mulf %3, %8 : vector<8x32xf32>
    %10 = arith.truncf %9 : vector<8x32xf32> to vector<8x32xbf16>
    %c0_4 = arith.constant 0 : index
    %c0_5 = arith.constant 0 : index
    %11 = vector.load %arg3[%c0_4, %c0_5] : memref<32x32xbf16, #tpu.memory_space<vmem>>, vector<32x32xbf16>
    %cst_6 = arith.constant dense<0.000000e+00> : vector<8x32xf32>
    %12 = tpu.matmul %10, %11, %cst_6 {dimension_numbers = #tpu.dot_dimension_numbers<[1], [0], [0], [1], [0, 0, 1, 1], [], []>} : vector<8x32xbf16>, vector<32x32xbf16>, vector<8x32xf32> -> vector<8x32xf32>
    %13 = arith.negf %12 : vector<8x32xf32>
    %14 = math.exp %13 : vector<8x32xf32>
    %cst_7 = arith.constant 1.000000e+00 : f32
    %15 = vector.broadcast %cst_7 : f32 to vector<8x32xf32>
    %16 = arith.addf %15, %14 : vector<8x32xf32>
    %17 = arith.divf %15, %16 : vector<8x32xf32>
    %18 = arith.mulf %12, %17 : vector<8x32xf32>
    %19 = arith.truncf %18 : vector<8x32xf32> to vector<8x32xbf16>
    %c0_8 = arith.constant 0 : index
    %c0_9 = arith.constant 0 : index
    %20 = vector.load %arg4[%c0_8, %c0_9] : memref<32x32xbf16, #tpu.memory_space<vmem>>, vector<32x32xbf16>
    %cst_10 = arith.constant dense<0.000000e+00> : vector<8x32xf32>
    %21 = tpu.matmul %19, %20, %cst_10 {dimension_numbers = #tpu.dot_dimension_numbers<[1], [0], [0], [1], [0, 0, 1, 1], [], []>} : vector<8x32xbf16>, vector<32x32xbf16>, vector<8x32xf32> -> vector<8x32xf32>
    %22 = arith.negf %21 : vector<8x32xf32>
    %23 = math.exp %22 : vector<8x32xf32>
    %cst_11 = arith.constant 1.000000e+00 : f32
    %24 = vector.broadcast %cst_11 : f32 to vector<8x32xf32>
    %25 = arith.addf %24, %23 : vector<8x32xf32>
    %26 = arith.divf %24, %25 : vector<8x32xf32>
    %27 = arith.mulf %21, %26 : vector<8x32xf32>
    %28 = arith.truncf %27 : vector<8x32xf32> to vector<8x32xbf16>
    %c0_12 = arith.constant 0 : index
    %c0_13 = arith.constant 0 : index
    %29 = vector.load %arg5[%c0_12, %c0_13] : memref<32x128xbf16, #tpu.memory_space<vmem>>, vector<32x128xbf16>
    %cst_14 = arith.constant dense<0.000000e+00> : vector<8x128xf32>
    %30 = tpu.matmul %28, %29, %cst_14 {dimension_numbers = #tpu.dot_dimension_numbers<[1], [0], [0], [1], [0, 0, 1, 1], [], []>} : vector<8x32xbf16>, vector<32x128xbf16>, vector<8x128xf32> -> vector<8x128xf32>
    %c0_15 = arith.constant 0 : index
    %c0_16 = arith.constant 0 : index
    %31 = vector.load %arg6[%c0_15, %c0_16] : memref<8x128xf32, #tpu.memory_space<vmem>>, vector<8x128xf32>
    tpu.vector_store %arg6[%c0_15, %c0_16], %30 {strides = array<i32>} : memref<8x128xf32, #tpu.memory_space<vmem>>, vector<8x128xf32>,
    return
  }
  func.func @transform_0(%arg0: i32) -> (i32, i32) {
    %c0_i32 = arith.constant 0 : i32
    %c0_i32_0 = arith.constant 0 : i32
    return %arg0, %c0_i32 : i32, i32
  }
  func.func @transform_1(%arg0: i32) -> (i32, i32) {
    %c0_i32 = arith.constant 0 : i32
    %c0_i32_0 = arith.constant 0 : i32
    %c0_i32_1 = arith.constant 0 : i32
    return %c0_i32, %c0_i32_0 : i32, i32
  }
  func.func @transform_2(%arg0: i32) -> (i32, i32) {
    %c0_i32 = arith.constant 0 : i32
    %c0_i32_0 = arith.constant 0 : i32
    %c0_i32_1 = arith.constant 0 : i32
    return %c0_i32, %c0_i32_0 : i32, i32
  }
  func.func @transform_3(%arg0: i32) -> (i32, i32) {
    %c0_i32 = arith.constant 0 : i32
    %c0_i32_0 = arith.constant 0 : i32
    %c0_i32_1 = arith.constant 0 : i32
    return %c0_i32, %c0_i32_0 : i32, i32
  }
  func.func @transform_4(%arg0: i32) -> (i32, i32) {
    %c0_i32 = arith.constant 0 : i32
    %c0_i32_0 = arith.constant 0 : i32
    %c0_i32_1 = arith.constant 0 : i32
    return %c0_i32, %c0_i32_0 : i32, i32
  }
  func.func @transform_5(%arg0: i32) -> (i32, i32) {
    %c0_i32 = arith.constant 0 : i32
    %c0_i32_0 = arith.constant 0 : i32
    return %arg0, %c0_i32 : i32, i32
  }
}

</mosaic_0001>

<llo_original>
// kernel: mlp_forward.1
$region0: #{mlp_forward.1}
  #allocation0 [shape = 'u32[]', space=smem, size = 0x4, offset = 0x4, fixed_abs, tag = 'smem constant byte address 0x4 - core index']
  #allocation1 [shape = 'u32[144,128]{1,0:T(1,128)}', space=vmem, size = 0x12000, scoped, tag = 'internal scratch']
  %s0 = inlined_call_operand.vmem [shape: f32[8,16], index: 0, kind: input, shape index: {}]
  %s1 = inlined_call_operand.vmem [shape: bf16[16,32], index: 1, kind: input, shape index: {}]
  %s2 = inlined_call_operand.vmem [shape: bf16[32,32], index: 2, kind: input, shape index: {}]
  %s3 = inlined_call_operand.vmem [shape: bf16[32,32], index: 3, kind: input, shape index: {}]
  %s4 = inlined_call_operand.vmem [shape: bf16[32,128], index: 4, kind: input, shape index: {}]
  %s5 = inlined_call_operand.vmem [shape: f32[8,128], index: 5, kind: output, shape index: {}]
  %s6 = sld [smem:[#allocation0]]
  $region30: #{mlp_forward.1} parent=0
    _
  %s8 = ssub.s32 1, %s6
  %s9 = scalar_select 0, %s8, %s6
  // Predicated region
  $region2: #{mlp_forward.1} parent=0 // pred_check
    _
  $region3: #{mlp_forward.1} parent=0 // pred_check_branch
    %11 = sbr.rel (0) target = $region5
  $region4: #{mlp_forward.1} parent=0 // pred_region
    _
  $region5: #{mlp_forward.1} parent=0 // pred_fallthru
    _
  // Predicated region
  $region6: #{mlp_forward.1} parent=0 // pred_check
    _
  $region7: #{mlp_forward.1} parent=0 // pred_check_branch
    %13 = sbr.rel (0) target = $region9
  $region8: #{mlp_forward.1} parent=0 // pred_region
    _
  $region9: #{mlp_forward.1} parent=0 // pred_fallthru
    _
  // Predicated region
  $region10: #{mlp_forward.1} parent=0 // pred_check
    _
  $region11: #{mlp_forward.1} parent=0 // pred_check_branch
    %15 = sbr.rel (0) target = $region13
  $region12: #{mlp_forward.1} parent=0 // pred_region
    _
  $region13: #{mlp_forward.1} parent=0 // pred_fallthru
    _
  // Predicated region
  $region14: #{mlp_forward.1} parent=0 // pred_check
    _
  $region15: #{mlp_forward.1} parent=0 // pred_check_branch
    %17 = sbr.rel (0) target = $region17
  $region16: #{mlp_forward.1} parent=0 // pred_region
    _
  $region17: #{mlp_forward.1} parent=0 // pred_fallthru
    _
  // Predicated region
  $region18: #{mlp_forward.1} parent=0 // pred_check
    _
  $region19: #{mlp_forward.1} parent=0 // pred_check_branch
    %19 = sbr.rel (0) target = $region21
  $region20: #{mlp_forward.1} parent=0 // pred_region
    _
  $region21: #{mlp_forward.1} parent=0 // pred_fallthru
    _
  %v21 = vld [vmem:[%s0] sm:$0xff]
  %v22 = vpack.c.bf16 %v21, %v21
  %v23 = vld [vmem:[%s1] sm:$0xf]
  %v24 = vld [vmem:[%s1 + $0x4] sm:$0xf]
  %v27 = vunpack.c.l.b16 %v23
  %v28 = vunpack.c.l.b16 %v24
  %v29 = vpack.c.b16 %v28, %v27
  %vm31 = vcmask 130048
  %v33 = vsel %vm31, %v22, 0
  %35 = vmatprep.subr.bf16.mxu0 0
  %36 = vmatpush1.bf16.msra.mxu0 %v29
  %37 = vmatprep.subr.bf16.mxu0 0
  %38 = vmatpush1.bf16.msra.mxu0 0
  %39 = vmatprep.subr.bf16.mxu0 0
  %40 = vmatpush1.bf16.msra.mxu0 0
  %41 = vmatprep.subr.bf16.mxu0 0
  %42 = vmatpush1.bf16.msra.mxu0 0
  %43 = vmatprep.subr.bf16.mxu0 0
  %44 = vmatpush1.bf16.msra.mxu0 0
  %45 = vmatprep.subr.bf16.mxu0 0
  %46 = vmatpush1.bf16.msra.mxu0 0
  %47 = vmatprep.subr.bf16.mxu0 0
  %48 = vmatpush1.bf16.msra.mxu0 0
  %49 = vmatprep.subr.bf16.mxu0 0
  %50 = vmatpush1.bf16.msra.mxu0 0
  %51 = vmatprep.subr.bf16.mxu0 0
  %52 = vmatpush1.bf16.msra.mxu0 0
  %53 = vmatprep.subr.bf16.mxu0 0
  %54 = vmatpush1.bf16.msra.mxu0 0
  %55 = vmatprep.subr.bf16.mxu0 0
  %56 = vmatpush1.bf16.msra.mxu0 0
  %57 = vmatprep.subr.bf16.mxu0 0
  %58 = vmatpush1.bf16.msra.mxu0 0
  %59 = vmatprep.subr.bf16.mxu0 0
  %60 = vmatpush1.bf16.msra.mxu0 0
  %61 = vmatprep.subr.bf16.mxu0 0
  %62 = vmatpush1.bf16.msra.mxu0 0
  %63 = vmatprep.subr.bf16.mxu0 0
  %64 = vmatpush1.bf16.msra.mxu0 0
  %65 = vmatprep.subr.bf16.mxu0 0
  %66 = vmatpush1.bf16.msra.mxu0 0
  %67 = vmatprep.mubr.bf16.mxu0 0
  %68 = vmatmul.mubr.bf16.gmra.mrb[0].mxu0 %v33
  %v69 = vpop.f32.mrb[0].mxu0
  %v70 = vadd.f32 0.0, %v69
  %v71 = vpop.f32.mrb[0].mxu0
  %v72 = vpop.f32.mrb[0].mxu0
  %v73 = vpop.f32.mrb[0].mxu0
  %74 = vdwg.mxu0
  %v75 = vxor.u32 %v70, 2147483648
  %v76 = vmul.f32 %v75, 1.442695
  %v77 = vpow.pop %v76
  %v78 = vadd.f32 %v77, 1.0
  %v79 = vrcp.pop %v78
  %v80 = vmul.f32 1.0, %v79
  %v81 = vmul.f32 %v70, %v80
  %v82 = vpack.c.bf16 %v81, %v81
  %v83 = vld [vmem:[%s2] sm:$0xf]
  %v84 = vld [vmem:[%s2 + $0x4] sm:$0xf]
  %v85 = vld [vmem:[%s2 + $0x8] sm:$0xf]
  %v86 = vld [vmem:[%s2 + $0xc] sm:$0xf]
  %v91 = vunpack.c.l.b16 %v83
  %v92 = vunpack.c.l.b16 %v84
  %v93 = vunpack.c.l.b16 %v85
  %v94 = vunpack.c.l.b16 %v86
  %v95 = vpack.c.b16 %v92, %v91
  %v96 = vpack.c.b16 %v94, %v93
  %vm99 = vcmask 261120
  %v101 = vsel %vm99, %v82, 0
  %103 = vmatprep.subr.bf16.mxu0 0
  %104 = vmatpush1.bf16.msra.mxu0 %v95
  %105 = vmatprep.subr.bf16.mxu0 0
  %106 = vmatpush1.bf16.msra.mxu0 %v96
  %107 = vmatprep.subr.bf16.mxu0 0
  %108 = vmatpush1.bf16.msra.mxu0 0
  %109 = vmatprep.subr.bf16.mxu0 0
  %110 = vmatpush1.bf16.msra.mxu0 0
  %111 = vmatprep.subr.bf16.mxu0 0
  %112 = vmatpush1.bf16.msra.mxu0 0
  %113 = vmatprep.subr.bf16.mxu0 0
  %114 = vmatpush1.bf16.msra.mxu0 0
  %115 = vmatprep.subr.bf16.mxu0 0
  %116 = vmatpush1.bf16.msra.mxu0 0
  %117 = vmatprep.subr.bf16.mxu0 0
  %118 = vmatpush1.bf16.msra.mxu0 0
  %119 = vmatprep.subr.bf16.mxu0 0
  %120 = vmatpush1.bf16.msra.mxu0 0
  %121 = vmatprep.subr.bf16.mxu0 0
  %122 = vmatpush1.bf16.msra.mxu0 0
  %123 = vmatprep.subr.bf16.mxu0 0
  %124 = vmatpush1.bf16.msra.mxu0 0
  %125 = vmatprep.subr.bf16.mxu0 0
  %126 = vmatpush1.bf16.msra.mxu0 0
  %127 = vmatprep.subr.bf16.mxu0 0
  %128 = vmatpush1.bf16.msra.mxu0 0
  %129 = vmatprep.subr.bf16.mxu0 0
  %130 = vmatpush1.bf16.msra.mxu0 0
  %131 = vmatprep.subr.bf16.mxu0 0
  %132 = vmatpush1.bf16.msra.mxu0 0
  %133 = vmatprep.subr.bf16.mxu0 0
  %134 = vmatpush1.bf16.msra.mxu0 0
  %135 = vmatprep.mubr.bf16.mxu0 0
  %136 = vmatmul.mubr.bf16.gmra.mrb[0].mxu0 %v101
  %v137 = vpop.f32.mrb[0].mxu0
  %v138 = vadd.f32 0.0, %v137
  %v139 = vpop.f32.mrb[0].mxu0
  %v140 = vpop.f32.mrb[0].mxu0
  %v141 = vpop.f32.mrb[0].mxu0
  %142 = vdwg.mxu0
  %v143 = vxor.u32 %v138, 2147483648
  %v144 = vmul.f32 %v143, 1.442695
  %v145 = vpow.pop %v144
  %v146 = vadd.f32 %v145, 1.0
  %v147 = vrcp.pop %v146
  %v148 = vmul.f32 1.0, %v147
  %v149 = vmul.f32 %v138, %v148
  %v150 = vpack.c.bf16 %v149, %v149
  %v151 = vld [vmem:[%s3] sm:$0xf]
  %v152 = vld [vmem:[%s3 + $0x4] sm:$0xf]
  %v153 = vld [vmem:[%s3 + $0x8] sm:$0xf]
  %v154 = vld [vmem:[%s3 + $0xc] sm:$0xf]
  %v159 = vunpack.c.l.b16 %v151
  %v160 = vunpack.c.l.b16 %v152
  %v161 = vunpack.c.l.b16 %v153
  %v162 = vunpack.c.l.b16 %v154
  %v163 = vpack.c.b16 %v160, %v159
  %v164 = vpack.c.b16 %v162, %v161
  %v168 = vsel %vm99, %v150, 0
  %170 = vmatprep.subr.bf16.mxu0 0
  %171 = vmatpush1.bf16.msra.mxu0 %v163
  %172 = vmatprep.subr.bf16.mxu0 0
  %173 = vmatpush1.bf16.msra.mxu0 %v164
  %174 = vmatprep.subr.bf16.mxu0 0
  %175 = vmatpush1.bf16.msra.mxu0 0
  %176 = vmatprep.subr.bf16.mxu0 0
  %177 = vmatpush1.bf16.msra.mxu0 0
  %178 = vmatprep.subr.bf16.mxu0 0
  %179 = vmatpush1.bf16.msra.mxu0 0
  %180 = vmatprep.subr.bf16.mxu0 0
  %181 = vmatpush1.bf16.msra.mxu0 0
  %182 = vmatprep.subr.bf16.mxu0 0
  %183 = vmatpush1.bf16.msra.mxu0 0
  %184 = vmatprep.subr.bf16.mxu0 0
  %185 = vmatpush1.bf16.msra.mxu0 0
  %186 = vmatprep.subr.bf16.mxu0 0
  %187 = vmatpush1.bf16.msra.mxu0 0
  %188 = vmatprep.subr.bf16.mxu0 0
  %189 = vmatpush1.bf16.msra.mxu0 0
  %190 = vmatprep.subr.bf16.mxu0 0
  %191 = vmatpush1.bf16.msra.mxu0 0
  %192 = vmatprep.subr.bf16.mxu0 0
  %193 = vmatpush1.bf16.msra.mxu0 0
  %194 = vmatprep.subr.bf16.mxu0 0
  %195 = vmatpush1.bf16.msra.mxu0 0
  %196 = vmatprep.subr.bf16.mxu0 0
  %197 = vmatpush1.bf16.msra.mxu0 0
  %198 = vmatprep.subr.bf16.mxu0 0
  %199 = vmatpush1.bf16.msra.mxu0 0
  %200 = vmatprep.subr.bf16.mxu0 0
  %201 = vmatpush1.bf16.msra.mxu0 0
  %202 = vmatprep.mubr.bf16.mxu0 0
  %203 = vmatmul.mubr.bf16.gmra.mrb[0].mxu0 %v168
  %v204 = vpop.f32.mrb[0].mxu0
  %v205 = vadd.f32 0.0, %v204
  %v206 = vpop.f32.mrb[0].mxu0
  %v207 = vpop.f32.mrb[0].mxu0
  %v208 = vpop.f32.mrb[0].mxu0
  %209 = vdwg.mxu0
  %v210 = vxor.u32 %v205, 2147483648
  %v211 = vmul.f32 %v210, 1.442695
  %v212 = vpow.pop %v211
  %v213 = vadd.f32 %v212, 1.0
  %v214 = vrcp.pop %v213
  %v215 = vmul.f32 1.0, %v214
  %v216 = vmul.f32 %v205, %v215
  %v217 = vpack.c.bf16 %v216, %v216
  %v218 = vld [vmem:[%s4] sm:$0xf]
  %v219 = vld [vmem:[%s4 + $0x4] sm:$0xf]
  %v220 = vld [vmem:[%s4 + $0x8] sm:$0xf]
  %v221 = vld [vmem:[%s4 + $0xc] sm:$0xf]
  %v226 = vunpack.c.l.b16 %v218
  %v227 = vunpack.c.l.b16 %v219
  %v228 = vunpack.c.l.b16 %v220
  %v229 = vunpack.c.l.b16 %v221
  %v230 = vpack.c.b16 %v227, %v226
  %v231 = vpack.c.b16 %v229, %v228
  %v235 = vsel %vm99, %v217, 0
  %237 = vmatprep.subr.bf16.mxu0 0
  %238 = vmatpush1.bf16.msra.mxu0 %v230
  %239 = vmatprep.subr.bf16.mxu0 0
  %240 = vmatpush1.bf16.msra.mxu0 %v231
  %241 = vmatprep.subr.bf16.mxu0 0
  %242 = vmatpush1.bf16.msra.mxu0 0
  %243 = vmatprep.subr.bf16.mxu0 0
  %244 = vmatpush1.bf16.msra.mxu0 0
  %245 = vmatprep.subr.bf16.mxu0 0
  %246 = vmatpush1.bf16.msra.mxu0 0
  %247 = vmatprep.subr.bf16.mxu0 0
  %248 = vmatpush1.bf16.msra.mxu0 0
  %249 = vmatprep.subr.bf16.mxu0 0
  %250 = vmatpush1.bf16.msra.mxu0 0
  %251 = vmatprep.subr.bf16.mxu0 0
  %252 = vmatpush1.bf16.msra.mxu0 0
  %253 = vmatprep.subr.bf16.mxu0 0
  %254 = vmatpush1.bf16.msra.mxu0 0
  %255 = vmatprep.subr.bf16.mxu0 0
  %256 = vmatpush1.bf16.msra.mxu0 0
  %257 = vmatprep.subr.bf16.mxu0 0
  %258 = vmatpush1.bf16.msra.mxu0 0
  %259 = vmatprep.subr.bf16.mxu0 0
  %260 = vmatpush1.bf16.msra.mxu0 0
  %261 = vmatprep.subr.bf16.mxu0 0
  %262 = vmatpush1.bf16.msra.mxu0 0
  %263 = vmatprep.subr.bf16.mxu0 0
  %264 = vmatpush1.bf16.msra.mxu0 0
  %265 = vmatprep.subr.bf16.mxu0 0
  %266 = vmatpush1.bf16.msra.mxu0 0
  %267 = vmatprep.subr.bf16.mxu0 0
  %268 = vmatpush1.bf16.msra.mxu0 0
  %269 = vmatprep.mubr.bf16.mxu0 0
  %270 = vmatmul.mubr.bf16.gmra.mrb[0].mxu0 %v235
  %v271 = vpop.f32.mrb[0].mxu0
  %v272 = vadd.f32 0.0, %v271
  %v273 = vpop.f32.mrb[0].mxu0
  %v274 = vpop.f32.mrb[0].mxu0
  %v275 = vpop.f32.mrb[0].mxu0
  %276 = vdwg.mxu0
  %277 = vst [vmem:[%s5] sm:$0xff] %v272
  // Predicated region
  $region22: #{mlp_forward.1} parent=0 // pred_check
    _
  $region23: #{mlp_forward.1} parent=0 // pred_check_branch
    %279 = sbr.rel (0) target = $region25
  $region24: #{mlp_forward.1} parent=0 // pred_region
    _
  $region25: #{mlp_forward.1} parent=0 // pred_fallthru
    _
  // Predicated region
  $region26: #{mlp_forward.1} parent=0 // pred_check
    _
  $region27: #{mlp_forward.1} parent=0 // pred_check_branch
    %281 = sbr.rel (0) target = $region29
  $region28: #{mlp_forward.1} parent=0 // pred_region
    _
  $region29: #{mlp_forward.1} parent=0 // pred_fallthru
    _

</llo_original>
